<compile_context>
chip_gen: v6e
topology: v6e:2x2x1
jax: 0.10.0
libtpu: 0.0.40
codegen_flags: <defaults>
</compile_context>

<pallas_src>
import jax
import jax.numpy as jnp
from jax import lax
from jax.experimental import pallas as pl
from jax.experimental.pallas import tpu as pltpu


def _round_up(x, m):
    return ((x + m - 1) // m) * m


def _multi_embed_kernel(idx_ref, tables_ref, out_ref):
    # idx_ref    : (TB, C)       int32  batch tile of category indices
    # tables_ref : (C, Vpad, D)  f32    stacked (padded) embedding tables, VMEM-resident
    # out_ref    : (TB, C*D)     f32    batch-major, flattened per-category embeddings
    idx = idx_ref[...]
    TB, C = idx.shape
    _, Vpad, D = tables_ref.shape
    # One iota reused by every category (hoisted out of the unrolled loop).
    iota = lax.broadcasted_iota(jnp.int32, (TB, Vpad), 1)
    # C is a small static constant -> unrolled Python loop of per-category
    # one-hot matmuls (C x fewer MACs than a block-diagonal fused matmul).
    for c in range(C):
        onehot = (iota == idx[:, c:c + 1]).astype(jnp.float32)
        emb = jnp.dot(onehot, tables_ref[c], preferred_element_type=jnp.float32)
        out_ref[:, c * D:(c + 1) * D] = emb.astype(out_ref.dtype)


def _choose_tile_b(B, requested):
    tb = max(8, min(_round_up(requested, 8), _round_up(B, 8)))
    # Keep >= 2 grid steps when B allows it (v7x shards "parallel" axes over 2 TCs).
    if pl.cdiv(B, tb) < 2 and B > 8:
        tb = max(8, _round_up(pl.cdiv(B, 2), 8))
    return tb


def multi_embeddings_forward(indices, tables, *, do_flatten=False, tile_b=256):
    """indices: (*, C) integer array; tables: (C, Vpad, D) float32 stacked tables."""
    *batch_shape, C = indices.shape
    Ct, Vpad, D = tables.shape
    assert Ct == C
    CD = C * D

    B = 1
    for s in batch_shape:
        B *= s
    idx_flat = indices.reshape(B, C).astype(jnp.int32)

    tb = _choose_tile_b(B, tile_b)
    B_pad = _round_up(B, tb)
    if B_pad != B:
        # Pad with index 0 (always valid); padded rows are sliced off below.
        idx_flat = jnp.pad(idx_flat, ((0, B_pad - B), (0, 0)))

    # Rough double-buffered VMEM footprint (lane-padded) to decide whether the
    # default scoped limit needs raising.
    lane = 128
    est_vmem = 4 * (2 * tb * _round_up(C, lane)            # index tiles (int32)
                    + 2 * C * Vpad * _round_up(D, lane)    # stacked tables
                    + 2 * tb * _round_up(CD, lane))        # output tiles
    cp_kwargs = dict(dimension_semantics=("parallel",))
    if est_vmem > 16 * 1024 * 1024:
        cp_kwargs["vmem_limit_bytes"] = min(int(est_vmem * 1.5), 100 * 1024 * 1024)

    out_2d = pl.pallas_call(
        _multi_embed_kernel,
        out_shape=jax.ShapeDtypeStruct((B_pad, CD), tables.dtype),
        grid=(B_pad // tb,),
        in_specs=[
            pl.BlockSpec((tb, C), lambda i: (i, 0)),          # batch tile of indices
            pl.BlockSpec((C, Vpad, D), lambda i: (0, 0, 0)),  # stacked tables, resident
        ],
        out_specs=pl.BlockSpec((tb, CD), lambda i: (i, 0)),    # batch-major, lane-dense
        compiler_params=pltpu.CompilerParams(**cp_kwargs),
    )(idx_flat, tables)

    out_2d = out_2d[:B]
    if do_flatten:
        return out_2d.reshape(*batch_shape, CD)
    return out_2d.reshape(*batch_shape, C, D)


def init_tables(key, choices_per_category, embedding_dim):
    """Deterministic synthetic weights, matching nn.Embedding's default N(0,1) init."""
    C = len(choices_per_category)
    Vmax = max(choices_per_category)
    Vpad = _round_up(Vmax, 8)
    keys = jax.random.split(key, C)
    tables = []
    for k, v in zip(keys, choices_per_category):
        w = jax.random.normal(k, (v, embedding_dim), dtype=jnp.float32)
        w = jnp.pad(w, ((0, Vpad - v), (0, 0)))
        tables.append(w)
    return jnp.stack(tables, axis=0)   # (C, Vpad, D)


if __name__ == "__main__":
    key = jax.random.PRNGKey(0)
    k_w, k_idx = jax.random.split(key)

    choices_per_category = [5, 7, 11]
    embedding_dim = 32
    batch_shape = (2, 8)                # leading "*" dims
    C = len(choices_per_category)

    tables = init_tables(k_w, choices_per_category, embedding_dim)

    # input: (*, num_category) discrete actions
    idx_keys = jax.random.split(k_idx, C)
    cols = [jax.random.randint(idx_keys[c], batch_shape, 0, choices_per_category[c],
                               dtype=jnp.int32) for c in range(C)]
    indices = jnp.stack(cols, axis=-1)  # (2, 8, 3)

    out = multi_embeddings_forward(indices, tables, do_flatten=False)
    out_flat = multi_embeddings_forward(indices, tables, do_flatten=True)
    jax.block_until_ready(out)
    jax.block_until_ready(out_flat)

    # Pure-JAX reference (torch semantics: per-category embedding lookup, stacked on dim=-2).
    ref = jnp.stack(
        [jnp.take(tables[c], indices[..., c], axis=0) for c in range(C)], axis=-2
    )
    assert out.shape == (*batch_shape, C, embedding_dim)
    assert out_flat.shape == (*batch_shape, C * embedding_dim)
    assert jnp.allclose(out, ref, atol=1e-5, rtol=1e-5)
    assert jnp.allclose(out_flat, ref.reshape(*batch_shape, C * embedding_dim),
                        atol=1e-5, rtol=1e-5)

    print("KERNEL_OK")
</pallas_src>

<mosaic_0001>
module attributes {stable_mosaic.version = 11 : i64} {
  func.func @_multi_embed_kernel(%arg0: i32, %arg1: memref<8x3xi32, #tpu.memory_space<vmem>>, %arg2: memref<3x16x32xf32, #tpu.memory_space<vmem>>, %arg3: memref<8x96xf32, #tpu.memory_space<vmem>>) attributes {dimension_semantics = [#tpu.dimension_semantics<parallel>], iteration_bounds = array<i64: 2>, scalar_prefetch = 0 : i64, scratch_operands = 0 : i64, tpu.core_type = #tpu.core_type<tc>, window_params = [{transform_indices = @transform_0, window_bounds = array<i64: 8, 3>}, {pipeline_mode = #tpu.pipeline_mode<synchronous>, transform_indices = @transform_1, window_bounds = array<i64: 3, 16, 32>}, {transform_indices = @transform_2, window_bounds = array<i64: 8, 96>}]} {
    %c0 = arith.constant 0 : index
    %c0_0 = arith.constant 0 : index
    %0 = vector.load %arg1[%c0, %c0_0] : memref<8x3xi32, #tpu.memory_space<vmem>>, vector<8x3xi32>
    %1 = tpu.iota {dimensions = array<i32: 1>} : vector<8x16xi32>
    %2 = vector.extract_strided_slice %0 {offsets = [0, 0], sizes = [8, 1], strides = [1, 1]} : vector<8x3xi32> to vector<8x1xi32>
    %3 = vector.broadcast %2 : vector<8x1xi32> to vector<8x16xi32>
    %4 = arith.cmpi eq, %1, %3 : vector<8x16xi32>
    %5 = arith.extui %4 : vector<8x16xi1> to vector<8x16xi32>
    %6 = arith.sitofp %5 : vector<8x16xi32> to vector<8x16xf32>
    %c0_1 = arith.constant 0 : index
    %c0_2 = arith.constant 0 : index
    %c0_3 = arith.constant 0 : index
    %7 = vector.load %arg2[%c0_1, %c0_2, %c0_3] : memref<3x16x32xf32, #tpu.memory_space<vmem>>, vector<1x16x32xf32>
    %8 = vector.shape_cast %7 : vector<1x16x32xf32> to vector<16x32xf32>
    %cst = arith.constant dense<0.000000e+00> : vector<8x32xf32>
    %9 = tpu.matmul %6, %8, %cst {dimension_numbers = #tpu.dot_dimension_numbers<[1], [0], [0], [1], [0, 0, 1, 1], [], []>} : vector<8x16xf32>, vector<16x32xf32>, vector<8x32xf32> -> vector<8x32xf32>
    %c0_4 = arith.constant 0 : index
    %c0_5 = arith.constant 0 : index
    %10 = vector.load %arg3[%c0_4, %c0_5] : memref<8x96xf32, #tpu.memory_space<vmem>>, vector<8x32xf32>
    tpu.vector_store %arg3[%c0_4, %c0_5], %9 {strides = array<i32>} : memref<8x96xf32, #tpu.memory_space<vmem>>, vector<8x32xf32>,
    %11 = vector.extract_strided_slice %0 {offsets = [0, 1], sizes = [8, 1], strides = [1, 1]} : vector<8x3xi32> to vector<8x1xi32>
    %12 = vector.broadcast %11 : vector<8x1xi32> to vector<8x16xi32>
    %13 = arith.cmpi eq, %1, %12 : vector<8x16xi32>
    %14 = arith.extui %13 : vector<8x16xi1> to vector<8x16xi32>
    %15 = arith.sitofp %14 : vector<8x16xi32> to vector<8x16xf32>
    %c1 = arith.constant 1 : index
    %c0_6 = arith.constant 0 : index
    %c0_7 = arith.constant 0 : index
    %16 = vector.load %arg2[%c1, %c0_6, %c0_7] : memref<3x16x32xf32, #tpu.memory_space<vmem>>, vector<1x16x32xf32>
    %17 = vector.shape_cast %16 : vector<1x16x32xf32> to vector<16x32xf32>
    %cst_8 = arith.constant dense<0.000000e+00> : vector<8x32xf32>
    %18 = tpu.matmul %15, %17, %cst_8 {dimension_numbers = #tpu.dot_dimension_numbers<[1], [0], [0], [1], [0, 0, 1, 1], [], []>} : vector<8x16xf32>, vector<16x32xf32>, vector<8x32xf32> -> vector<8x32xf32>
    %c0_9 = arith.constant 0 : index
    %c32 = arith.constant 32 : index
    %19 = vector.load %arg3[%c0_9, %c32] : memref<8x96xf32, #tpu.memory_space<vmem>>, vector<8x32xf32>
    tpu.vector_store %arg3[%c0_9, %c32], %18 {strides = array<i32>} : memref<8x96xf32, #tpu.memory_space<vmem>>, vector<8x32xf32>,
    %20 = vector.extract_strided_slice %0 {offsets = [0, 2], sizes = [8, 1], strides = [1, 1]} : vector<8x3xi32> to vector<8x1xi32>
    %21 = vector.broadcast %20 : vector<8x1xi32> to vector<8x16xi32>
    %22 = arith.cmpi eq, %1, %21 : vector<8x16xi32>
    %23 = arith.extui %22 : vector<8x16xi1> to vector<8x16xi32>
    %24 = arith.sitofp %23 : vector<8x16xi32> to vector<8x16xf32>
    %c2 = arith.constant 2 : index
    %c0_10 = arith.constant 0 : index
    %c0_11 = arith.constant 0 : index
    %25 = vector.load %arg2[%c2, %c0_10, %c0_11] : memref<3x16x32xf32, #tpu.memory_space<vmem>>, vector<1x16x32xf32>
    %26 = vector.shape_cast %25 : vector<1x16x32xf32> to vector<16x32xf32>
    %cst_12 = arith.constant dense<0.000000e+00> : vector<8x32xf32>
    %27 = tpu.matmul %24, %26, %cst_12 {dimension_numbers = #tpu.dot_dimension_numbers<[1], [0], [0], [1], [0, 0, 1, 1], [], []>} : vector<8x16xf32>, vector<16x32xf32>, vector<8x32xf32> -> vector<8x32xf32>
    %c0_13 = arith.constant 0 : index
    %c64 = arith.constant 64 : index
    %28 = vector.load %arg3[%c0_13, %c64] : memref<8x96xf32, #tpu.memory_space<vmem>>, vector<8x32xf32>
    tpu.vector_store %arg3[%c0_13, %c64], %27 {strides = array<i32>} : memref<8x96xf32, #tpu.memory_space<vmem>>, vector<8x32xf32>,
    return
  }
  func.func @transform_0(%arg0: i32) -> (i32, i32) {
    %c0_i32 = arith.constant 0 : i32
    %c0_i32_0 = arith.constant 0 : i32
    return %arg0, %c0_i32 : i32, i32
  }
  func.func @transform_1(%arg0: i32) -> (i32, i32, i32) {
    %c0_i32 = arith.constant 0 : i32
    %c0_i32_0 = arith.constant 0 : i32
    %c0_i32_1 = arith.constant 0 : i32
    %c0_i32_2 = arith.constant 0 : i32
    return %c0_i32, %c0_i32_0, %c0_i32_1 : i32, i32, i32
  }
  func.func @transform_2(%arg0: i32) -> (i32, i32) {
    %c0_i32 = arith.constant 0 : i32
    %c0_i32_0 = arith.constant 0 : i32
    return %arg0, %c0_i32 : i32, i32
  }
}

</mosaic_0001>

<llo_original>
// kernel: tpu_custom_call.1
$region0: #{tpu_custom_call.1}
  #allocation0 [shape = 'u32[]', space=smem, size = 0x4, offset = 0x4, fixed_abs, tag = 'smem constant byte address 0x4 - core index']
  #allocation1 [shape = 'u32[144,128]{1,0:T(1,128)}', space=vmem, size = 0x12000, scoped, tag = 'internal scratch']
  %s0 = inlined_call_operand.vmem [shape: s32[16,3], index: 0, kind: input, shape index: {}]
  %s1 = inlined_call_operand.hbm [shape: f32[3,16,32], index: 1, kind: input, shape index: {}]
  %s2 = inlined_call_operand.hbm [shape: f32[16,96], index: 2, kind: output, shape index: {}]
  %s3 = sld [smem:[#allocation0]]
  $region45: #{tpu_custom_call.1} parent=0
    _
  %s5 = ssub.s32 1, %s3
  %s6 = scalar_select 0, %s5, %s3
  $region1: #{tpu_custom_call.1} parent=0
    #allocation2 [shape = 'u8[24576]{0}', space=vmem, size = 0x6000, scoped, tag = 'input window, operand 1, single buffered']
    #allocation3 [shape = 's32[2]{0}', space=sflag, size = 0x8, scoped, tag = 'scoped memory for tpu_custom_call.1']
    #allocation4 [shape = 's32[2]{0}', space=sflag, size = 0x8, scoped, tag = 'scoped memory for tpu_custom_call.1']
    #allocation5 [shape = 'u8[8192]{0}', space=vmem, size = 0x2000, scoped, tag = 'output window, operand 0']
    %7 = vsyncpa [#allocation3], 0
    %8 = vsyncpa [#allocation4], 0
    %s9 = scalar_lea.sflag [#allocation4], 1
    %10 = vsyncpa %s9, 0
    loop: start=0, step=1, limit=4
    $region2: #{tpu_custom_call.1} parent=1 // loop_pre_header
      _
    $region3: #{tpu_custom_call.1} parent=1 // loop_header
      %s12 = sphi 0, %s16
      %p13 = scmp.ge.s32.totalorder %s12, 4
      %s22 = sphi 0, %s24
      %s25 = sphi 0, %s22
      %s26 = sphi 0, %s25
      %s42 = sphi 0, %s26
      %s46 = sphi 0, %s46
      %s48 = sphi 0, %s46
      %s49 = sphi 0, %s48
      %s63 = sphi 0, %s49
      %s69 = sphi 0, %s71
      %s72 = sphi 0, %s69
      %s73 = sphi 0, %s72
      %s89 = sphi 0, %s73
    $region4: #{tpu_custom_call.1} parent=1 // loop_header_branch
      %15 = sbr.rel (%p13) target = $region8
    $region5: #{tpu_custom_call.1} parent=1 // loop_body
      %s17 = ssub.s32 %s12, 1
      %s18 = ssub.s32 %s12, 2
      %s19 = sadd.s32 %s12, 1
      %s20 = ssub.s32 %s12, %s19
      %p21 = scmp.eq.s32.totalorder %s20, 0
      %s23 = sadd.s32 %s22, 1
      %s24 = scalar_select %p21, %s22, %s23
      %p27 = pneg %p21
      %p28 = scmp.eq.s32.totalorder %s12, 1
      %p29 = por %p27, %p28
      %p30 = scmp.ne.s32.totalorder %s22, %s25
      %p31 = scmp.eq.s32.totalorder %s12, 0
      %p32 = por %p30, %p31
      %p33 = scmp.ne.s32.totalorder %s22, %s25
      %p34 = scmp.eq.s32.totalorder %s17, 1
      %p35 = por %p33, %p34
      %p36 = scmp.ne.s32.totalorder %s25, %s26
      %p37 = scmp.eq.s32.totalorder %s17, 0
      %p38 = por %p36, %p37
      %p39 = scmp.ne.s32.totalorder %s25, %s26
      %p40 = scmp.eq.s32.totalorder %s18, 1
      %p41 = por %p39, %p40
      %p43 = scmp.ne.s32.totalorder %s26, %s42
      %p44 = scmp.eq.s32.totalorder %s18, 0
      %p45 = por %p43, %p44
      %s47 = sadd.s32 %s46, 1
      %p50 = scmp.eq.s32.totalorder %s12, 1
      %p51 = scmp.ne.s32.totalorder %s46, %s48
      %p52 = scmp.eq.s32.totalorder %s12, 0
      %p53 = por %p51, %p52
      %p54 = scmp.ne.s32.totalorder %s46, %s48
      %p55 = scmp.eq.s32.totalorder %s17, 1
      %p56 = por %p54, %p55
      %p57 = scmp.ne.s32.totalorder %s48, %s49
      %p58 = scmp.eq.s32.totalorder %s17, 0
      %p59 = por %p57, %p58
      %p60 = scmp.ne.s32.totalorder %s48, %s49
      %p61 = scmp.eq.s32.totalorder %s18, 1
      %p62 = por %p60, %p61
      %p64 = scmp.ne.s32.totalorder %s49, %s63
      %p65 = scmp.eq.s32.totalorder %s18, 0
      %p66 = por %p64, %p65
      %s67 = ssub.s32 %s12, %s19
      %p68 = scmp.eq.s32.totalorder %s67, 0
      %s70 = sadd.s32 %s69, 1
      %s71 = scalar_select %p68, %s69, %s70
      %p74 = pneg %p68
      %p75 = scmp.eq.s32.totalorder %s12, 1
      %p76 = por %p74, %p75
      %p77 = scmp.ne.s32.totalorder %s69, %s72
      %p78 = scmp.eq.s32.totalorder %s12, 0
      %p79 = por %p77, %p78
      %p80 = scmp.ne.s32.totalorder %s69, %s72
      %p81 = scmp.eq.s32.totalorder %s17, 1
      %p82 = por %p80, %p81
      %p83 = scmp.ne.s32.totalorder %s72, %s73
      %p84 = scmp.eq.s32.totalorder %s17, 0
      %p85 = por %p83, %p84
      %p86 = scmp.ne.s32.totalorder %s72, %s73
      %p87 = scmp.eq.s32.totalorder %s18, 1
      %p88 = por %p86, %p87
      %p90 = scmp.ne.s32.totalorder %s73, %s89
      %p91 = scmp.eq.s32.totalorder %s18, 0
      %p92 = por %p90, %p91
      %p93 = scmp.le.s32.totalorder 1, %s12
      %p94 = scmp.lt.s32.totalorder %s12, 3
      %p95 = pnand %p93, %p94
      %p96 = pneg %p95
      // Predicated region
      $region9: #{tpu_custom_call.1} parent=5 // pred_check
        _
      $region10: #{tpu_custom_call.1} parent=5 // pred_check_branch
        %98 = sbr.rel (%p95) target = $region12
      $region11: #{tpu_custom_call.1} parent=5 // pred_region
        %s99 = ssub.s32 %s12, 1
        // Predicated region
        $region13: #{tpu_custom_call.1} parent=11 // pred_check
          %p100 = pneg %p59
        $region14: #{tpu_custom_call.1} parent=11 // pred_check_branch
          %102 = sbr.rel (%p100) target = $region16
        $region15: #{tpu_custom_call.1} parent=11 // pred_region
          %s104 = ssub.s32 768, 768
          %105 = vsyncadd [#allocation3], %s104
          %s106 = sshll.u32 [#allocation2], 4
          %s107 = int_to_ptr.vmem [resolvable:$true] %s106
          %112 = dma.hbm_to_vmem [thread:$0]  %s1, 768, %s107, [#allocation3], 128, 128, 8
        $region16: #{tpu_custom_call.1} parent=11 // pred_fallthru
          _
      $region12: #{tpu_custom_call.1} parent=5 // pred_fallthru
        _
      %p113 = scmp.lt.s32.totalorder %s12, 2
      // Predicated region
      $region17: #{tpu_custom_call.1} parent=5 // pred_check
        %p114 = pneg %p113
      $region18: #{tpu_custom_call.1} parent=5 // pred_check_branch
        %116 = sbr.rel (%p114) target = $region20
      $region19: #{tpu_custom_call.1} parent=5 // pred_region
        // Predicated region
        $region21: #{tpu_custom_call.1} parent=19 // pred_check
          %p117 = pneg %p32
        $region22: #{tpu_custom_call.1} parent=19 // pred_check_branch
          %119 = sbr.rel (%p117) target = $region24
        $region23: #{tpu_custom_call.1} parent=19 // pred_region
          %p120 = scmp.lt.s32.totalorder %s12, 1
          %s121 = scalar_select %p120, %s12, 1
          %s122 = smul.addr %s121, 8
          %s123 = scalar_lea.vmem %s0, %s122
        $region24: #{tpu_custom_call.1} parent=19 // pred_fallthru
          _
      $region20: #{tpu_custom_call.1} parent=5 // pred_fallthru
        _
      %p124 = scmp.le.s32.totalorder 1, %s12
      %p125 = scmp.lt.s32.totalorder %s12, 3
      %p126 = pnand %p124, %p125
      %p127 = pneg %p126
      // Predicated region
      $region25: #{tpu_custom_call.1} parent=5 // pred_check
        _
      $region26: #{tpu_custom_call.1} parent=5 // pred_check_branch
        %129 = sbr.rel (%p126) target = $region28
      $region27: #{tpu_custom_call.1} parent=5 // pred_region
        %s130 = ssub.s32 %s12, 1
        // Predicated region
        $region29: #{tpu_custom_call.1} parent=27 // pred_check
          %p131 = pneg %p59
        $region30: #{tpu_custom_call.1} parent=27 // pred_check_branch
          %133 = sbr.rel (%p131) target = $region32
        $region31: #{tpu_custom_call.1} parent=27 // pred_region
          %134 = dma.done [#allocation3], 768
        $region32: #{tpu_custom_call.1} parent=27 // pred_fallthru
          _
        %p135 = scmp.lt.s32.totalorder %s17, 1
        %s136 = scalar_select %p135, %s17, 1
        %s137 = smul.addr %s136, 8
        %s138 = scalar_lea.vmem %s0, %s137
        %p139 = pneg %p38
        %p140 = pneg %p35
        %p141 = pneg %p59
        %p142 = pneg %p56
        %p143 = pneg %p85
        %p144 = pneg %p82
        %s145 = sand.u32 %s72, 1
        %s146 = scalar_lea.sflag [#allocation4], %s145
        %s147 = sand.u32 %s72, 1
        %s148 = smul.addr %s147, 8
        %s149 = scalar_lea.vmem [#allocation5], %s148
        %p150 = scmp.lt.s32.totalorder %s17, 1
        %s151 = scalar_select %p150, %s17, 1
        %s152 = smul.addr %s151, 8
        %s153 = scalar_lea.vmem %s0, %s152
        %v154 = vld [vmem:[%s153] sm:$0xff]
        %v155 = vlaneseq
        %v156 = vand.u32 %v155, 127
        %157 = vset.pattern.permute.xlu0 0
        %158 = vperm.xlu0 %157, %v154
        %v159 = vpop.permute.xlu0 %158
        %vm160 = vcmp.eq.s32.totalorder %v156, %v159
        %v161 = vsel %vm160, 1, 0
        %v162 = vcvt.s32.f32 %v161
        %v163 = vld [vmem:[#allocation2] sm:$0xff]
        %v164 = vld [vmem:[#allocation2 + $0x8] sm:$0xff]
        %vm165 = vcmask 130048
        %v167 = vsel %vm165, %v162, 0
        %169 = vmatprep.subr.mxu0 0.0
        %170 = vmatpush1.msra.mxu0 0.0
        %171 = vmatprep.subr.mxu0 0.0
        %172 = vmatpush1.msra.mxu0 0.0
        %173 = vmatprep.subr.mxu0 0.0
        %174 = vmatpush1.msra.mxu0 0.0
        %175 = vmatprep.subr.mxu0 0.0
        %176 = vmatpush1.msra.mxu0 0.0
        %177 = vmatprep.subr.mxu0 0.0
        %178 = vmatpush1.msra.mxu0 0.0
        %179 = vmatprep.subr.mxu0 0.0
        %180 = vmatpush1.msra.mxu0 0.0
        %181 = vmatprep.subr.mxu0 0.0
        %182 = vmatpush1.msra.mxu0 0.0
        %183 = vmatprep.subr.mxu0 0.0
        %184 = vmatpush1.msra.mxu0 0.0
        %185 = vmatprep.subr.mxu0 0.0
        %186 = vmatpush1.msra.mxu0 0.0
        %187 = vmatprep.subr.mxu0 0.0
        %188 = vmatpush1.msra.mxu0 0.0
        %189 = vmatprep.subr.mxu0 0.0
        %190 = vmatpush1.msra.mxu0 0.0
        %191 = vmatprep.subr.mxu0 0.0
        %192 = vmatpush1.msra.mxu0 0.0
        %193 = vmatprep.subr.mxu0 0.0
        %194 = vmatpush1.msra.mxu0 0.0
        %195 = vmatprep.subr.mxu0 0.0
        %196 = vmatpush1.msra.mxu0 0.0
        %197 = vmatprep.subr.mxu0 0.0
        %198 = vmatpush1.msra.mxu0 %v164
        %199 = vmatprep.subr.mxu0 0.0
        %200 = vmatpush1.msra.mxu0 %v163
        %201 = vmatprep.subr.mxu0 0.0
        %202 = vmatpush2.msra.mxu0 0.0
        %203 = vmatprep.subr.mxu0 0.0
        %204 = vmatpush2.msra.mxu0 0.0
        %205 = vmatprep.subr.mxu0 0.0
        %206 = vmatpush2.msra.mxu0 0.0
        %207 = vmatprep.subr.mxu0 0.0
        %208 = vmatpush2.msra.mxu0 0.0
        %209 = vmatprep.subr.mxu0 0.0
        %210 = vmatpush2.msra.mxu0 0.0
        %211 = vmatprep.subr.mxu0 0.0
        %212 = vmatpush2.msra.mxu0 0.0
        %213 = vmatprep.subr.mxu0 0.0
        %214 = vmatpush2.msra.mxu0 0.0
        %215 = vmatprep.subr.mxu0 0.0
        %216 = vmatpush2.msra.mxu0 0.0
        %217 = vmatprep.subr.mxu0 0.0
        %218 = vmatpush2.msra.mxu0 0.0
        %219 = vmatprep.subr.mxu0 0.0
        %220 = vmatpush2.msra.mxu0 0.0
        %221 = vmatprep.subr.mxu0 0.0
        %222 = vmatpush2.msra.mxu0 0.0
        %223 = vmatprep.subr.mxu0 0.0
        %224 = vmatpush2.msra.mxu0 0.0
        %225 = vmatprep.subr.mxu0 0.0
        %226 = vmatpush2.msra.mxu0 0.0
        %227 = vmatprep.subr.mxu0 0.0
        %228 = vmatpush2.msra.mxu0 0.0
        %229 = vmatprep.subr.mxu0 0.0
        %230 = vmatpush2.msra.mxu0 0.0
        %231 = vmatprep.subr.mxu0 0.0
        %232 = vmatpush2.msra.mxu0 0.0
        %233 = vmatprep.mubr.f32.mxu0 0.0
        %234 = vmatmul.mubr.f32.gmra.mxu0 %v167
        %v235 = vpop.f32.mrf.mxu0
        %v236 = vadd.f32 0.0, %v235
        %v237 = vpop.f32.mrf.mxu0
        %238 = vdwg.mxu0
        %vm239 = vcmask 261120
        %240 = vst.msk [vmem:[%s149] sm:$0xff] %vm239, %v236
        %241 = vset.pattern.permute.xlu0 1
        %242 = vperm.xlu0 %241, %v154
        %v243 = vpop.permute.xlu0 %242
        %vm244 = vcmp.eq.s32.totalorder %v156, %v243
        %v245 = vsel %vm244, 1, 0
        %v246 = vcvt.s32.f32 %v245
        %s247 = scalar_lea.vmem [#allocation2], 16
        %v248 = vld [vmem:[%s247] sm:$0xff]
        %v249 = vld [vmem:[%s247 + $0x8] sm:$0xff]
        %v251 = vsel %vm165, %v246, 0
        %253 = vmatprep.subr.mxu0 0.0
        %254 = vmatpush1.msra.mxu0 0.0
        %255 = vmatprep.subr.mxu0 0.0
        %256 = vmatpush1.msra.mxu0 0.0
        %257 = vmatprep.subr.mxu0 0.0
        %258 = vmatpush1.msra.mxu0 0.0
        %259 = vmatprep.subr.mxu0 0.0
        %260 = vmatpush1.msra.mxu0 0.0
        %261 = vmatprep.subr.mxu0 0.0
        %262 = vmatpush1.msra.mxu0 0.0
        %263 = vmatprep.subr.mxu0 0.0
        %264 = vmatpush1.msra.mxu0 0.0
        %265 = vmatprep.subr.mxu0 0.0
        %266 = vmatpush1.msra.mxu0 0.0
        %267 = vmatprep.subr.mxu0 0.0
        %268 = vmatpush1.msra.mxu0 0.0
        %269 = vmatprep.subr.mxu0 0.0
        %270 = vmatpush1.msra.mxu0 0.0
        %271 = vmatprep.subr.mxu0 0.0
        %272 = vmatpush1.msra.mxu0 0.0
        %273 = vmatprep.subr.mxu0 0.0
        %274 = vmatpush1.msra.mxu0 0.0
        %275 = vmatprep.subr.mxu0 0.0
        %276 = vmatpush1.msra.mxu0 0.0
        %277 = vmatprep.subr.mxu0 0.0
        %278 = vmatpush1.msra.mxu0 0.0
        %279 = vmatprep.subr.mxu0 0.0
        %280 = vmatpush1.msra.mxu0 0.0
        %281 = vmatprep.subr.mxu0 0.0
        %282 = vmatpush1.msra.mxu0 %v249
        %283 = vmatprep.subr.mxu0 0.0
        %284 = vmatpush1.msra.mxu0 %v248
        %285 = vmatprep.subr.mxu0 0.0
        %286 = vmatpush2.msra.mxu0 0.0
        %287 = vmatprep.subr.mxu0 0.0
        %288 = vmatpush2.msra.mxu0 0.0
        %289 = vmatprep.subr.mxu0 0.0
        %290 = vmatpush2.msra.mxu0 0.0
        %291 = vmatprep.subr.mxu0 0.0
        %292 = vmatpush2.msra.mxu0 0.0
        %293 = vmatprep.subr.mxu0 0.0
        %294 = vmatpush2.msra.mxu0 0.0
        %295 = vmatprep.subr.mxu0 0.0
        %296 = vmatpush2.msra.mxu0 0.0
        %297 = vmatprep.subr.mxu0 0.0
        %298 = vmatpush2.msra.mxu0 0.0
        %299 = vmatprep.subr.mxu0 0.0
        %300 = vmatpush2.msra.mxu0 0.0
        %301 = vmatprep.subr.mxu0 0.0
        %302 = vmatpush2.msra.mxu0 0.0
        %303 = vmatprep.subr.mxu0 0.0
        %304 = vmatpush2.msra.mxu0 0.0
        %305 = vmatprep.subr.mxu0 0.0
        %306 = vmatpush2.msra.mxu0 0.0
        %307 = vmatprep.subr.mxu0 0.0
        %308 = vmatpush2.msra.mxu0 0.0
        %309 = vmatprep.subr.mxu0 0.0
        %310 = vmatpush2.msra.mxu0 0.0
        %311 = vmatprep.subr.mxu0 0.0
        %312 = vmatpush2.msra.mxu0 0.0
        %313 = vmatprep.subr.mxu0 0.0
        %314 = vmatpush2.msra.mxu0 0.0
        %315 = vmatprep.subr.mxu0 0.0
        %316 = vmatpush2.msra.mxu0 0.0
        %317 = vmatprep.mubr.f32.mxu0 0.0
        %318 = vmatmul.mubr.f32.gmra.mxu0 %v251
        %v319 = vpop.f32.mrf.mxu0
        %v320 = vadd.f32 0.0, %v319
        %v321 = vpop.f32.mrf.mxu0
        %322 = vdwg.mxu0
        %324 = vrot.lane.b32.xlu0 %v320, 32
        %v325 = vpop.permute.xlu0 %324
        %vm327 = vcmask 523520
        %328 = vst.msk [vmem:[%s149] sm:$0xff] %vm327, %v325
        %329 = vset.pattern.permute.xlu0 2
        %330 = vperm.xlu0 %329, %v154
        %v331 = vpop.permute.xlu0 %330
        %vm332 = vcmp.eq.s32.totalorder %v156, %v331
        %v333 = vsel %vm332, 1, 0
        %v334 = vcvt.s32.f32 %v333
        %s335 = scalar_lea.vmem [#allocation2], 32
        %v336 = vld [vmem:[%s335] sm:$0xff]
        %v337 = vld [vmem:[%s335 + $0x8] sm:$0xff]
        %v339 = vsel %vm165, %v334, 0
        %341 = vmatprep.subr.mxu0 0.0
        %342 = vmatpush1.msra.mxu0 0.0
        %343 = vmatprep.subr.mxu0 0.0
        %344 = vmatpush1.msra.mxu0 0.0
        %345 = vmatprep.subr.mxu0 0.0
        %346 = vmatpush1.msra.mxu0 0.0
        %347 = vmatprep.subr.mxu0 0.0
        %348 = vmatpush1.msra.mxu0 0.0
        %349 = vmatprep.subr.mxu0 0.0
        %350 = vmatpush1.msra.mxu0 0.0
        %351 = vmatprep.subr.mxu0 0.0
        %352 = vmatpush1.msra.mxu0 0.0
        %353 = vmatprep.subr.mxu0 0.0
        %354 = vmatpush1.msra.mxu0 0.0
        %355 = vmatprep.subr.mxu0 0.0
        %356 = vmatpush1.msra.mxu0 0.0
        %357 = vmatprep.subr.mxu0 0.0
        %358 = vmatpush1.msra.mxu0 0.0
        %359 = vmatprep.subr.mxu0 0.0
        %360 = vmatpush1.msra.mxu0 0.0
        %361 = vmatprep.subr.mxu0 0.0
        %362 = vmatpush1.msra.mxu0 0.0
        %363 = vmatprep.subr.mxu0 0.0
        %364 = vmatpush1.msra.mxu0 0.0
        %365 = vmatprep.subr.mxu0 0.0
        %366 = vmatpush1.msra.mxu0 0.0
        %367 = vmatprep.subr.mxu0 0.0
        %368 = vmatpush1.msra.mxu0 0.0
        %369 = vmatprep.subr.mxu0 0.0
        %370 = vmatpush1.msra.mxu0 %v337
        %371 = vmatprep.subr.mxu0 0.0
        %372 = vmatpush1.msra.mxu0 %v336
        %373 = vmatprep.subr.mxu0 0.0
        %374 = vmatpush2.msra.mxu0 0.0
        %375 = vmatprep.subr.mxu0 0.0
        %376 = vmatpush2.msra.mxu0 0.0
        %377 = vmatprep.subr.mxu0 0.0
        %378 = vmatpush2.msra.mxu0 0.0
        %379 = vmatprep.subr.mxu0 0.0
        %380 = vmatpush2.msra.mxu0 0.0
        %381 = vmatprep.subr.mxu0 0.0
        %382 = vmatpush2.msra.mxu0 0.0
        %383 = vmatprep.subr.mxu0 0.0
        %384 = vmatpush2.msra.mxu0 0.0
        %385 = vmatprep.subr.mxu0 0.0
        %386 = vmatpush2.msra.mxu0 0.0
        %387 = vmatprep.subr.mxu0 0.0
        %388 = vmatpush2.msra.mxu0 0.0
        %389 = vmatprep.subr.mxu0 0.0
        %390 = vmatpush2.msra.mxu0 0.0
        %391 = vmatprep.subr.mxu0 0.0
        %392 = vmatpush2.msra.mxu0 0.0
        %393 = vmatprep.subr.mxu0 0.0
        %394 = vmatpush2.msra.mxu0 0.0
        %395 = vmatprep.subr.mxu0 0.0
        %396 = vmatpush2.msra.mxu0 0.0
        %397 = vmatprep.subr.mxu0 0.0
        %398 = vmatpush2.msra.mxu0 0.0
        %399 = vmatprep.subr.mxu0 0.0
        %400 = vmatpush2.msra.mxu0 0.0
        %401 = vmatprep.subr.mxu0 0.0
        %402 = vmatpush2.msra.mxu0 0.0
        %403 = vmatprep.subr.mxu0 0.0
        %404 = vmatpush2.msra.mxu0 0.0
        %405 = vmatprep.mubr.f32.mxu0 0.0
        %406 = vmatmul.mubr.f32.gmra.mxu0 %v339
        %v407 = vpop.f32.mrf.mxu0
        %v408 = vadd.f32 0.0, %v407
        %v409 = vpop.f32.mrf.mxu0
        %410 = vdwg.mxu0
        %412 = vrot.lane.b32.xlu0 %v408, 64
        %v413 = vpop.permute.xlu0 %412
        %vm415 = vcmask 785920
        %416 = vst.msk [vmem:[%s149] sm:$0xff] %vm415, %v413
        %s417 = sand.u32 %s72, 1
        %s418 = scalar_lea.sflag [#allocation4], %s417
        %s419 = sand.u32 %s72, 1
        %s420 = smul.addr %s419, 8
        %s421 = scalar_lea.vmem [#allocation5], %s420
        // Predicated region
        $region33: #{tpu_custom_call.1} parent=27 // pred_check
          %p422 = pneg %p82
        $region34: #{tpu_custom_call.1} parent=27 // pred_check_branch
          %424 = sbr.rel (%p422) target = $region36
        $region35: #{tpu_custom_call.1} parent=27 // pred_region
          %s426 = ssub.s32 128, 128
          %427 = vsyncadd %s418, %s426
          %s428 = smul.addr %s17, 128
          %s429 = scalar_lea.hbm %s2, %s428
          %s431 = sshll.u32 %s421, 4
          %s432 = int_to_ptr.vmem [resolvable:$true] %s431
          %434 = dma.vmem_to_hbm [thread:$0]  %s432, 128, %s429, %s418
        $region36: #{tpu_custom_call.1} parent=27 // pred_fallthru
          _
      $region28: #{tpu_custom_call.1} parent=5 // pred_fallthru
        _
      %p435 = scmp.le.s32.totalorder 2, %s12
      // Predicated region
      $region37: #{tpu_custom_call.1} parent=5 // pred_check
        %p436 = pneg %p435
      $region38: #{tpu_custom_call.1} parent=5 // pred_check_branch
        %438 = sbr.rel (%p436) target = $region40
      $region39: #{tpu_custom_call.1} parent=5 // pred_region
        %s439 = ssub.s32 %s12, 2
        // Predicated region
        $region41: #{tpu_custom_call.1} parent=39 // pred_check
          %p440 = pneg %p88
        $region42: #{tpu_custom_call.1} parent=39 // pred_check_branch
          %442 = sbr.rel (%p440) target = $region44
        $region43: #{tpu_custom_call.1} parent=39 // pred_region
          %s443 = sand.u32 %s73, 1
          %s444 = scalar_lea.sflag [#allocation4], %s443
          %s445 = sand.u32 %s73, 1
          %s446 = smul.addr %s445, 8
          %s447 = scalar_lea.vmem [#allocation5], %s446
          %448 = dma.done %s444, 128
        $region44: #{tpu_custom_call.1} parent=39 // pred_fallthru
          _
      $region40: #{tpu_custom_call.1} parent=5 // pred_fallthru
        _
    $region6: #{tpu_custom_call.1} parent=1 // loop_footer
      %s16 = sadd.s32 1, %s12
    $region7: #{tpu_custom_call.1} parent=1 // loop_footer_branch
      %11 = sbr.rel target = $region3
    $region8: #{tpu_custom_call.1} parent=1 // loop_exit
      _
    %449 = vsyncpa [#allocation3], 1
    %s450 = scalar_lea.sflag [#allocation3], 1
    %451 = vsyncpa %s450, 1
    %452 = vsyncpa [#allocation4], 1
    %s453 = scalar_lea.sflag [#allocation4], 1
    %454 = vsyncpa %s453, 1

</llo_original>
